<compile_context>
chip_gen: v5e
topology: v5e:2x2
jax: 0.10.0
libtpu: 0.0.40
codegen_flags: <defaults>
</compile_context>

<pallas_src>
import functools

import jax
import jax.numpy as jnp
from jax.experimental import pallas as pl
from jax.experimental.pallas import tpu as pltpu


# ----------------------------------------------------------------------------- helpers

def _round_up(x, m):
    return ((x + m - 1) // m) * m


def _round_down(x, m):
    return (x // m) * m


def _vmem_capacity_bytes():
    """Physical VMEM per TensorCore (generation-aware); conservative fallback = v7x 64 MiB."""
    try:
        info = pltpu.get_tpu_info()
        cap = int(getattr(info, "vmem_capacity_bytes", 0) or 0)
        if cap > 0:
            return cap
    except Exception:
        pass
    return 64 << 20


def _pick_tile_n(n, per_row_bytes, avail_bytes):
    """Largest MXU-friendly row tile whose working set fits, with enough grid steps to pipeline."""
    t = avail_bytes // per_row_bytes
    if t >= 256:
        t = _round_down(t, 256)          # MXU-friendly on v6e/v7x (also a multiple of 128 for v5e)
    elif t >= 128:
        t = 128
    else:
        t = max(8, _round_down(t, 8))
    # Keep >= ~8 grid steps for large N: DMA double-buffer overlap + v7x 2-TC sharding.
    t = min(t, max(256, _round_up((n + 7) // 8, 256)))
    t = min(t, 2048)                     # per-step overhead already amortized
    t = min(t, _round_up(n, 8))          # don't exceed the (8-padded) batch
    return max(t, 8)


# ----------------------------------------------------------------------------- kernel

def _head_kernel(x_ref, w_ref, b_ref, o_ref, *, num_classes):
    x = x_ref[...]
    w = w_ref[...]
    if x.dtype != w.dtype:
        # In-kernel cast (e.g. f32 -> bf16): keeps HBM x traffic at the source dtype,
        # VPU cast hides under the MXU matmul.
        x = x.astype(w.dtype)
    # Linear: logits = x @ W + b (MXU, f32 accumulate; bias add + softmax in f32).
    logits = jnp.dot(x, w, preferred_element_type=jnp.float32) + b_ref[...]
    # Numerically stable softmax over the (full, lane-padded) class axis.  Padded classes
    # have weight 0 and bias -1e30, so they contribute exactly 0 and are sliced off below.
    m = jnp.max(logits, axis=-1, keepdims=True)
    e = jnp.exp(logits - m)
    denom = jnp.sum(e, axis=-1, keepdims=True)
    r = pl.reciprocal(denom, approx=True)   # EUP slot (essentially free)
    r = r * (2.0 - denom * r)               # one Newton step -> ~f32 accuracy
    o_ref[...] = (e * r)[:, :num_classes].astype(o_ref.dtype)


# ----------------------------------------------------------------------------- wrappers

def prepare_head_params(weight, bias, *, compute_dtype=jnp.bfloat16):
    """One-time parameter prep: cast weight to the matmul dtype and pad the class axis to a
    lane-dense multiple of 128 (padded weight columns = 0, padded bias = -1e30 so padded
    classes get probability 0).  Do this once at parameter-load time, not per forward call.

    weight: (dim_in, num_classes); bias: (num_classes,).
    Returns (w_prepared, bias2d, num_classes).
    """
    dim_in, num_classes = weight.shape
    c_pad = _round_up(max(num_classes, 128), 128)
    pad_c = c_pad - num_classes

    w = weight if compute_dtype is None else weight.astype(compute_dtype)
    b = bias.astype(jnp.float32)
    if pad_c:
        w = jnp.pad(w, ((0, 0), (0, pad_c)))
        b = jnp.pad(b, ((0, pad_c),), constant_values=-1e30)
    return w, b.reshape(1, c_pad), num_classes


def transformer_basic_head_prepared(x, w_prepared, bias2d, num_classes, *,
                                    out_dtype=None, tile_n=None):
    """Steady-state forward: x (N, dim_in) with pre-padded/cast params from prepare_head_params."""
    n, dim_in = x.shape
    dim_in_w, c_pad = w_prepared.shape
    assert dim_in_w == dim_in, "weight/input feature-dim mismatch"
    out_dtype = x.dtype if out_dtype is None else out_dtype

    x_bytes = jnp.dtype(x.dtype).itemsize
    w_bytes = jnp.dtype(w_prepared.dtype).itemsize
    out_bytes = jnp.dtype(out_dtype).itemsize

    cap = _vmem_capacity_bytes()          # 128 MiB on v5e/v6e, 64 MiB per-TC on v7x
    budget = cap * 3 // 4                 # headroom for Mosaic scratch / sems / spills

    # Pallas double-buffers EVERY input spec by default, even with a constant index_map,
    # so the resident weight/bias cost 2 copies each.
    resident = 2 * (dim_in * c_pad * w_bytes + c_pad * 4)
    per_row = (2 * dim_in * x_bytes        # double-buffered x tile
               + 2 * num_classes * out_bytes  # double-buffered out tile
               + dim_in * w_bytes          # in-kernel low-precision copy of x
               + 2 * c_pad * 4)            # f32 logits / exp temporaries

    if resident + 8 * per_row > budget:
        # TODO(synk): tile the class axis (two-pass / online softmax) for huge heads.
        raise ValueError(
            f"TransformerBasicHead: resident weight block {dim_in}x{c_pad} "
            f"({resident / 2**20:.1f} MiB double-buffered) does not fit the VMEM budget "
            f"({budget / 2**20:.1f} MiB of {cap / 2**20:.0f} MiB); "
            f"class-axis tiling is not implemented.")

    if tile_n is None:
        tile_n = _pick_tile_n(n, per_row, budget - resident)

    usage = resident + tile_n * per_row
    vmem_limit = int(min(cap * 9 // 10, max(usage + (8 << 20), 32 << 20)))

    grid = (pl.cdiv(n, tile_n),)
    kernel = functools.partial(_head_kernel, num_classes=num_classes)

    return pl.pallas_call(
        kernel,
        out_shape=jax.ShapeDtypeStruct((n, num_classes), out_dtype),
        grid=grid,
        in_specs=[
            pl.BlockSpec((tile_n, dim_in), lambda i: (i, 0)),   # x tile walks the rows
            pl.BlockSpec((dim_in, c_pad), lambda i: (0, 0)),    # weight resident
            pl.BlockSpec((1, c_pad), lambda i: (0, 0)),         # bias resident
        ],
        # Last block dim equals the full array dim -> legal even when num_classes % 128 != 0;
        # avoids any post-kernel column-slice pass over the output.
        out_specs=pl.BlockSpec((tile_n, num_classes), lambda i: (i, 0)),
        compiler_params=pltpu.CompilerParams(
            dimension_semantics=("parallel",),   # row axis shards across v7x's 2 TensorCores
            vmem_limit_bytes=vmem_limit,
        ),
    )(x, w_prepared, bias2d)


def transformer_basic_head(x, weight, bias, *, compute_dtype=jnp.bfloat16,
                           out_dtype=None, tile_n=None):
    """Convenience one-shot entry (prep + run).  For repeated calls, call prepare_head_params
    once and reuse transformer_basic_head_prepared.

    x: (N, dim_in); weight: (dim_in, num_classes); bias: (num_classes,).
    compute_dtype: matmul-input dtype (default bf16; pass jnp.float32 or None for full f32).
    out_dtype: probability dtype (default x.dtype; bf16 halves output HBM traffic).
    """
    w_p, b_p, num_classes = prepare_head_params(weight, bias, compute_dtype=compute_dtype)
    return transformer_basic_head_prepared(x, w_p, b_p, num_classes,
                                           out_dtype=out_dtype, tile_n=tile_n)


def _reference(x, weight, bias):
    logits = x @ weight + bias[None, :]
    return jax.nn.softmax(logits, axis=1)


# ----------------------------------------------------------------------------- demo / checks

if __name__ == "__main__":
    key = jax.random.PRNGKey(0)
    k_x, k_w, k_b = jax.random.split(key, 3)

    # Small shapes consistent with the module's forward: x (batch, dim_in).
    batch, dim_in, num_classes = 8, 32, 16
    x = jax.random.normal(k_x, (batch, dim_in), dtype=jnp.float32)
    limit = (6.0 / (dim_in + num_classes)) ** 0.5  # xavier-uniform-like init
    weight = jax.random.uniform(
        k_w, (dim_in, num_classes), minval=-limit, maxval=limit, dtype=jnp.float32
    )
    bias = jax.random.uniform(
        k_b, (num_classes,), minval=-0.1, maxval=0.1, dtype=jnp.float32
    )
    ref = _reference(x, weight, bias)

    # 1) Default path: bf16 matmul inputs (in-kernel cast), f32 accumulate + softmax.
    out_bf16 = jax.block_until_ready(transformer_basic_head(x, weight, bias))
    assert out_bf16.shape == (batch, num_classes)
    assert jnp.allclose(out_bf16, ref, atol=2e-2, rtol=2e-2), "bf16 mismatch vs reference"

    # 2) Full-f32 path, tight tolerance (approx reciprocal + 1 Newton step keeps ~f32 accuracy).
    out_f32 = jax.block_until_ready(
        transformer_basic_head(x, weight, bias, compute_dtype=jnp.float32)
    )
    assert jnp.allclose(out_f32, ref, atol=1e-4, rtol=1e-4), "f32 mismatch vs reference"

    # 3) Multi-step grid + partial (edge) row block + non-128-multiple class axis
    #    (exercises the lane-padded softmax and the masked final lane-chunk store).
    k2x, k2w, k2b = jax.random.split(jax.random.PRNGKey(1), 3)
    n2, d2, c2 = 200, 64, 200
    x2 = jax.random.normal(k2x, (n2, d2), dtype=jnp.float32)
    w2 = jax.random.normal(k2w, (d2, c2), dtype=jnp.float32) * 0.05
    b2 = jax.random.normal(k2b, (c2,), dtype=jnp.float32) * 0.1
    ref2 = _reference(x2, w2, b2)

    w2p, b2p, c2n = prepare_head_params(w2, b2, compute_dtype=jnp.float32)
    out2 = jax.block_until_ready(
        transformer_basic_head_prepared(x2, w2p, b2p, c2n, tile_n=64)
    )
    assert out2.shape == (n2, c2)
    assert jnp.allclose(out2, ref2, atol=1e-4, rtol=1e-4), "tiled f32 mismatch vs reference"

    w2pb, b2pb, _ = prepare_head_params(w2, b2, compute_dtype=jnp.bfloat16)
    out2b = jax.block_until_ready(
        transformer_basic_head_prepared(x2, w2pb, b2pb, c2n, tile_n=64)
    )
    assert jnp.allclose(out2b, ref2, atol=2e-2, rtol=2e-2), "tiled bf16 mismatch vs reference"

    print("KERNEL_OK")
</pallas_src>

<mosaic_0001>
module attributes {stable_mosaic.version = 11 : i64} {
  func.func @_head_kernel(%arg0: i32, %arg1: memref<8x32xf32, #tpu.memory_space<vmem>>, %arg2: memref<32x128xbf16, #tpu.memory_space<vmem>>, %arg3: memref<1x128xf32, #tpu.memory_space<vmem>>, %arg4: memref<8x16xf32, #tpu.memory_space<vmem>>) attributes {dimension_semantics = [#tpu.dimension_semantics<parallel>], iteration_bounds = array<i64: 1>, scalar_prefetch = 0 : i64, scratch_operands = 0 : i64, tpu.core_type = #tpu.core_type<tc>, window_params = [{transform_indices = @transform_0, window_bounds = array<i64: 8, 32>}, {pipeline_mode = #tpu.pipeline_mode<synchronous>, transform_indices = @transform_1, window_bounds = array<i64: 32, 128>}, {pipeline_mode = #tpu.pipeline_mode<synchronous>, transform_indices = @transform_2, window_bounds = array<i64: 1, 128>}, {transform_indices = @transform_3, window_bounds = array<i64: 8, 16>}]} {
    %c0 = arith.constant 0 : index
    %c0_0 = arith.constant 0 : index
    %0 = vector.load %arg1[%c0, %c0_0] : memref<8x32xf32, #tpu.memory_space<vmem>>, vector<8x32xf32>
    %c0_1 = arith.constant 0 : index
    %c0_2 = arith.constant 0 : index
    %1 = vector.load %arg2[%c0_1, %c0_2] : memref<32x128xbf16, #tpu.memory_space<vmem>>, vector<32x128xbf16>
    %2 = arith.truncf %0 : vector<8x32xf32> to vector<8x32xbf16>
    %cst = arith.constant dense<0.000000e+00> : vector<8x128xf32>
    %3 = tpu.matmul %2, %1, %cst {dimension_numbers = #tpu.dot_dimension_numbers<[1], [0], [0], [1], [0, 0, 1, 1], [], []>} : vector<8x32xbf16>, vector<32x128xbf16>, vector<8x128xf32> -> vector<8x128xf32>
    %c0_3 = arith.constant 0 : index
    %c0_4 = arith.constant 0 : index
    %4 = vector.load %arg3[%c0_3, %c0_4] : memref<1x128xf32, #tpu.memory_space<vmem>>, vector<1x128xf32>
    %5 = vector.broadcast %4 : vector<1x128xf32> to vector<8x128xf32>
    %6 = arith.addf %3, %5 : vector<8x128xf32>
    %cst_5 = arith.constant dense<0xFF800000> : vector<8xf32>
    %7 = vector.multi_reduction <maximumf>, %6, %cst_5 [1] : vector<8x128xf32> to vector<8xf32>
    %8 = vector.shape_cast %7 : vector<8xf32> to vector<8x1xf32>
    %9 = vector.broadcast %8 : vector<8x1xf32> to vector<8x128xf32>
    %10 = arith.subf %6, %9 : vector<8x128xf32>
    %11 = math.exp %10 : vector<8x128xf32>
    %cst_6 = arith.constant dense<0.000000e+00> : vector<8xf32>
    %12 = vector.multi_reduction <add>, %11, %cst_6 [1] : vector<8x128xf32> to vector<8xf32>
    %13 = vector.shape_cast %12 : vector<8xf32> to vector<8x1xf32>
    %14 = tpu.reciprocal %13 {approx = true} : vector<8x1xf32> -> vector<8x1xf32>
    %15 = arith.mulf %13, %14 : vector<8x1xf32>
    %cst_7 = arith.constant 2.000000e+00 : f32
    %16 = vector.broadcast %cst_7 : f32 to vector<8x1xf32>
    %17 = arith.subf %16, %15 : vector<8x1xf32>
    %18 = arith.mulf %14, %17 : vector<8x1xf32>
    %19 = vector.broadcast %18 : vector<8x1xf32> to vector<8x128xf32>
    %20 = arith.mulf %11, %19 : vector<8x128xf32>
    %21 = vector.extract_strided_slice %20 {offsets = [0, 0], sizes = [8, 16], strides = [1, 1]} : vector<8x128xf32> to vector<8x16xf32>
    %c0_8 = arith.constant 0 : index
    %c0_9 = arith.constant 0 : index
    %22 = vector.load %arg4[%c0_8, %c0_9] : memref<8x16xf32, #tpu.memory_space<vmem>>, vector<8x16xf32>
    tpu.vector_store %arg4[%c0_8, %c0_9], %21 {strides = array<i32>} : memref<8x16xf32, #tpu.memory_space<vmem>>, vector<8x16xf32>,
    return
  }
  func.func @transform_0(%arg0: i32) -> (i32, i32) {
    %c0_i32 = arith.constant 0 : i32
    %c0_i32_0 = arith.constant 0 : i32
    return %arg0, %c0_i32 : i32, i32
  }
  func.func @transform_1(%arg0: i32) -> (i32, i32) {
    %c0_i32 = arith.constant 0 : i32
    %c0_i32_0 = arith.constant 0 : i32
    %c0_i32_1 = arith.constant 0 : i32
    return %c0_i32, %c0_i32_0 : i32, i32
  }
  func.func @transform_2(%arg0: i32) -> (i32, i32) {
    %c0_i32 = arith.constant 0 : i32
    %c0_i32_0 = arith.constant 0 : i32
    %c0_i32_1 = arith.constant 0 : i32
    return %c0_i32, %c0_i32_0 : i32, i32
  }
  func.func @transform_3(%arg0: i32) -> (i32, i32) {
    %c0_i32 = arith.constant 0 : i32
    %c0_i32_0 = arith.constant 0 : i32
    return %arg0, %c0_i32 : i32, i32
  }
}

</mosaic_0001>

<llo_original>
// kernel: tpu_custom_call.1
$region0: #{tpu_custom_call.1}
  #allocation0 [shape = 'u32[]', space=smem, size = 0x4, offset = 0x4, fixed_abs, tag = 'smem constant byte address 0x4 - core index']
  #allocation1 [shape = 'u32[72,128]{1,0:T(1,128)}', space=vmem, size = 0x9000, scoped, tag = 'internal scratch']
  %s0 = inlined_call_operand.hbm [shape: f32[8,32], index: 0, kind: input, shape index: {}]
  %s1 = inlined_call_operand.hbm [shape: bf16[32,128], index: 1, kind: input, shape index: {}]
  %s2 = inlined_call_operand.vmem [shape: f32[1,128], index: 2, kind: input, shape index: {}]
  %s3 = inlined_call_operand.hbm [shape: f32[8,16], index: 3, kind: output, shape index: {}]
  %s4 = sld [smem:[#allocation0]]
  $region30: #{tpu_custom_call.1} parent=0
    _
  %s6 = ssub.s32 1, %s4
  %s7 = scalar_select 0, %s6, %s4
  $region1: #{tpu_custom_call.1} parent=0
    #allocation2 [shape = 'u8[4096]{0}', space=vmem, size = 0x1000, scoped, tag = 'input window, operand 0, single buffered']
    #allocation3 [shape = 's32[1]{0}', space=sflag, size = 0x4, scoped, tag = 'scoped memory for tpu_custom_call.1']
    #allocation4 [shape = 's32[1]{0}', space=sflag, size = 0x4, scoped, tag = 'scoped memory for tpu_custom_call.1']
    #allocation5 [shape = 'u8[8192]{0}', space=vmem, size = 0x2000, scoped, tag = 'input window, operand 1, single buffered']
    #allocation6 [shape = 's32[1]{0}', space=sflag, size = 0x4, scoped, tag = 'scoped memory for tpu_custom_call.1']
    #allocation7 [shape = 'u8[4096]{0}', space=vmem, size = 0x1000, scoped, tag = 'output window, operand 0, single buffered']
    %8 = vsyncpa [#allocation3], 0
    %9 = vsyncpa [#allocation6], 0
    %10 = vsyncpa [#allocation4], 0
    // Predicated region
    $region2: #{tpu_custom_call.1} parent=1 // pred_check
      _
    $region3: #{tpu_custom_call.1} parent=1 // pred_check_branch
      %12 = sbr.rel (0) target = $region5
    $region4: #{tpu_custom_call.1} parent=1 // pred_region
      %14 = vsyncadd [#allocation3], 0
      %s16 = sshll.u32 %s0, 4
      %s17 = int_to_ptr.hbm [resolvable:$true] %s16
      %s18 = sshll.u32 [#allocation2], 4
      %s19 = int_to_ptr.vmem [resolvable:$true] %s18
      %21 = dma.hbm_to_vmem [thread:$0]  %s17, 128, %s19, [#allocation3]
    $region5: #{tpu_custom_call.1} parent=1 // pred_fallthru
      _
    // Predicated region
    $region6: #{tpu_custom_call.1} parent=1 // pred_check
      _
    $region7: #{tpu_custom_call.1} parent=1 // pred_check_branch
      %23 = sbr.rel (0) target = $region9
    $region8: #{tpu_custom_call.1} parent=1 // pred_region
      %25 = vsyncadd [#allocation6], 0
      %s26 = sshll.u32 %s1, 4
      %s27 = int_to_ptr.hbm [resolvable:$true] %s26
      %s28 = sshll.u32 [#allocation5], 4
      %s29 = int_to_ptr.vmem [resolvable:$true] %s28
      %34 = dma.hbm_to_vmem [thread:$0]  %s27, 256, %s29, [#allocation6], 64, 64, 4
    $region9: #{tpu_custom_call.1} parent=1 // pred_fallthru
      _
    // Predicated region
    $region10: #{tpu_custom_call.1} parent=1 // pred_check
      _
    $region11: #{tpu_custom_call.1} parent=1 // pred_check_branch
      %36 = sbr.rel (0) target = $region13
    $region12: #{tpu_custom_call.1} parent=1 // pred_region
      _
    $region13: #{tpu_custom_call.1} parent=1 // pred_fallthru
      _
    // Predicated region
    $region14: #{tpu_custom_call.1} parent=1 // pred_check
      _
    $region15: #{tpu_custom_call.1} parent=1 // pred_check_branch
      %38 = sbr.rel (0) target = $region17
    $region16: #{tpu_custom_call.1} parent=1 // pred_region
      %40 = dma.done [#allocation3], 128
    $region17: #{tpu_custom_call.1} parent=1 // pred_fallthru
      _
    // Predicated region
    $region18: #{tpu_custom_call.1} parent=1 // pred_check
      _
    $region19: #{tpu_custom_call.1} parent=1 // pred_check_branch
      %42 = sbr.rel (0) target = $region21
    $region20: #{tpu_custom_call.1} parent=1 // pred_region
      %44 = dma.done [#allocation6], 256
    $region21: #{tpu_custom_call.1} parent=1 // pred_fallthru
      _
    %v46 = vld [vmem:[#allocation2] sm:$0xff]
    %v47 = vld [vmem:[#allocation5] sm:$0xf]
    %v48 = vld [vmem:[#allocation5 + $0x4] sm:$0xf]
    %v49 = vld [vmem:[#allocation5 + $0x8] sm:$0xf]
    %v50 = vld [vmem:[#allocation5 + $0xc] sm:$0xf]
    %v51 = vpack.c.bf16 %v46, %v46
    %v52 = vld [vmem:[%s2] sm:$0x1]
    %v54 = vperm.slane %v52, 0
    %v60 = vunpack.c.l.b16 %v47
    %v61 = vunpack.c.l.b16 %v48
    %v62 = vunpack.c.l.b16 %v49
    %v63 = vunpack.c.l.b16 %v50
    %v64 = vpack.c.b16 %v61, %v60
    %v65 = vpack.c.b16 %v63, %v62
    %vm68 = vcmask 261120
    %v70 = vsel %vm68, %v51, 0
    %72 = vmatpush.bf16.msra.mxu0 0
    %73 = vmatpush.bf16.msra.mxu0 0
    %74 = vmatpush.bf16.msra.mxu0 0
    %75 = vmatpush.bf16.msra.mxu0 0
    %76 = vmatpush.bf16.msra.mxu0 0
    %77 = vmatpush.bf16.msra.mxu0 0
    %78 = vmatpush.bf16.msra.mxu0 %v65
    %79 = vmatpush.bf16.msra.mxu0 %v64
    %80 = vmatmul.bf16.gmra.mxu0 %v70
    %v81 = vpop.f32.mrf.mxu0
    %v82 = vadd.f32 %v54, %v81
    %v83 = vpop.f32.mrf.mxu0
    %84 = vdwg.mxu0
    %85 = vmax.xlane.f32.xlu0 %v82
    %v86 = vpop.xlane.xlu0 %85
    %v87 = vsub.f32 %v82, %v86
    %v88 = vmul.f32 %v87, 1.442695
    %v89 = vpow.pop %v88
    %90 = vadd.xlane.f32.xlu0 %v89
    %v91 = vpop.xlane.xlu0 %90
    %v92 = vrcp.pop %v91
    %v93 = vmul.f32 %v91, %v92
    %v94 = vsub.f32 2.0, %v93
    %v95 = vmul.f32 %v92, %v94
    %v96 = vmul.f32 %v89, %v95
    %vm97 = vcmask 130048
    %98 = vst.msk [vmem:[#allocation7] sm:$0xff] %vm97, %v96
    // Predicated region
    $region22: #{tpu_custom_call.1} parent=1 // pred_check
      _
    $region23: #{tpu_custom_call.1} parent=1 // pred_check_branch
      %100 = sbr.rel (0) target = $region25
    $region24: #{tpu_custom_call.1} parent=1 // pred_region
      %102 = vsyncadd [#allocation4], 0
      %s104 = sshll.u32 [#allocation7], 4
      %s105 = int_to_ptr.vmem [resolvable:$true] %s104
      %s106 = sshll.u32 %s3, 4
      %s107 = int_to_ptr.hbm [resolvable:$true] %s106
      %109 = dma.vmem_to_hbm [thread:$0]  %s105, 128, %s107, [#allocation4]
    $region25: #{tpu_custom_call.1} parent=1 // pred_fallthru
      _
    // Predicated region
    $region26: #{tpu_custom_call.1} parent=1 // pred_check
      _
    $region27: #{tpu_custom_call.1} parent=1 // pred_check_branch
      %111 = sbr.rel (0) target = $region29
    $region28: #{tpu_custom_call.1} parent=1 // pred_region
      %113 = dma.done [#allocation4], 128
    $region29: #{tpu_custom_call.1} parent=1 // pred_fallthru
      _
    %114 = vsyncpa [#allocation3], 1
    %115 = vsyncpa [#allocation6], 1
    %116 = vsyncpa [#allocation4], 1

</llo_original>
